<compile_context>
chip_gen: v7x
topology: tpu7x:2x2x1
jax: 0.10.0
libtpu: 0.0.40
codegen_flags: <defaults>
</compile_context>

<pallas_src>
import math

import jax
import jax.numpy as jnp
from jax.experimental import pallas as pl
from jax.experimental.pallas import tpu as pltpu

_LANES = 128
_TARGET_TILE_BYTES = 2 * 1024 * 1024  # ~2 MiB per block (4 buffers -> ~8 MiB VMEM)


def _sublane_pack(dtype) -> int:
    """Minimum sublane multiple for this dtype (f32:8, bf16/f16:16, int8/fp8:32)."""
    itemsize = jnp.dtype(dtype).itemsize
    return max(8, 32 // max(itemsize, 1))


def _scale_kernel(scale_ref, x_ref, o_ref):
    # scale_ref: (1,) f32 in SMEM.  Multiply in f32, cast once on store.
    o_ref[...] = (x_ref[...].astype(jnp.float32) * scale_ref[0]).astype(o_ref.dtype)


def _scaled_copy_2d(x2d: jax.Array, scale_f32: jax.Array) -> jax.Array:
    """Run the Pallas scaled-copy kernel on a lane-dense [R, 128] slab."""
    R, C = x2d.shape
    dsize = jnp.dtype(x2d.dtype).itemsize
    pack = _sublane_pack(x2d.dtype)

    # ~2 MiB blocks, rounded to a dtype-aware sublane multiple.
    target_rows = max(pack, (_TARGET_TILE_BYTES // (C * dsize)) // pack * pack)
    block_rows = R if R <= target_rows else target_rows
    grid = (pl.cdiv(R, block_rows),)

    return pl.pallas_call(
        _scale_kernel,
        out_shape=jax.ShapeDtypeStruct((R, C), x2d.dtype),
        grid=grid,
        in_specs=[
            # Whole (1,) scale array lives in SMEM (no tiling).
            pl.BlockSpec(memory_space=pltpu.MemorySpace.SMEM),
            pl.BlockSpec((block_rows, C), lambda i: (i, 0)),
        ],
        out_specs=pl.BlockSpec((block_rows, C), lambda i: (i, 0)),
        # Scale the gradient "in place": output aliases the grad-output buffer.
        input_output_aliases={1: 0},
        compiler_params=pltpu.CompilerParams(
            dimension_semantics=("parallel",),
            vmem_limit_bytes=32 * 1024 * 1024,
        ),
    )(scale_f32, x2d)


def _scaled_copy(x: jax.Array, scale) -> jax.Array:
    """Elementwise x * scale for arbitrary shape via the Pallas kernel."""
    orig_shape = x.shape
    pack = _sublane_pack(x.dtype)
    tile_elems = pack * _LANES

    flat = x.reshape(-1)
    n = flat.shape[0]
    padded = ((n + tile_elems - 1) // tile_elems) * tile_elems

    scale_f32 = jnp.asarray(scale, dtype=jnp.float32).reshape((1,))

    if padded != n:  # only pad the ragged tail; common shapes skip this entirely
        flat = jnp.pad(flat, (0, padded - n))
    x2d = flat.reshape(-1, _LANES)

    y2d = _scaled_copy_2d(x2d, scale_f32)

    y = y2d.reshape(-1)
    if padded != n:
        y = y[:n]
    return y.reshape(orig_shape)


# ----- gradient reverse function (custom VJP) -------------------------------

@jax.custom_vjp
def _gradient_reverse(x: jax.Array, coeff: jax.Array) -> jax.Array:
    del coeff
    return x  # true identity forward: zero extra HBM traffic


def _gr_fwd(x, coeff):
    return x, coeff


def _gr_bwd(coeff, g):
    # backward: grad_input = -coeff * grad_output  (Pallas scaled-copy kernel)
    grad_x = _scaled_copy(g, -coeff)
    return (grad_x, jnp.zeros_like(coeff))


_gradient_reverse.defvjp(_gr_fwd, _gr_bwd)


def gradient_reverse(x: jax.Array, coeff=1.0) -> jax.Array:
    """R(x) = x ; dR/dx = -coeff * I.  coeff is passed as a traced f32 scalar."""
    return _gradient_reverse(x, jnp.asarray(coeff, dtype=jnp.float32))


# ----- module-equivalent wrapper --------------------------------------------

class WarmStartGradientReverseLayer:
    """JAX/Pallas equivalent of the PyTorch WarmStartGradientReverseLayer."""

    def __init__(self, alpha=1.0, lo=0.0, hi=1.0, max_iters=220.0,
                 auto_step=False):
        self.alpha = alpha
        self.lo = lo
        self.hi = hi
        self.iter_num = 0
        self.max_iters = max_iters
        self.auto_step = auto_step

    def coeff(self) -> float:
        return float(
            2.0 * (self.hi - self.lo)
            / (1.0 + math.exp(-self.alpha * self.iter_num / self.max_iters))
            - (self.hi - self.lo) + self.lo
        )

    def __call__(self, x: jax.Array) -> jax.Array:
        c = self.coeff()
        if self.auto_step:
            self.step()
        return gradient_reverse(x, c)

    def step(self):
        self.iter_num += 1


if __name__ == "__main__":
    key = jax.random.PRNGKey(0)
    x = jax.random.normal(key, (2, 4, 16, 16), dtype=jnp.float32)  # NCHW

    layer = WarmStartGradientReverseLayer(alpha=1.0, lo=0.0, hi=1.0,
                                          max_iters=220.0, auto_step=True)

    # Forward: identity (no kernel launch).
    y = jax.block_until_ready(layer(x))
    assert y.shape == x.shape and y.dtype == x.dtype
    assert jnp.allclose(y, x), "forward must be identity"

    # Directly exercise the Pallas scaled-copy kernel once.
    z = jax.block_until_ready(_scaled_copy(x, 2.0))
    assert jnp.allclose(z, 2.0 * x), "scaled copy kernel mismatch"

    # Backward: gradient is reversed and scaled by the coefficient (f32 path).
    loss = lambda inp: jnp.sum(gradient_reverse(inp, 0.5))
    g = jax.block_until_ready(jax.grad(loss)(x))
    assert jnp.allclose(g, -0.5 * jnp.ones_like(x)), "backward must be -coeff"

    # Backward with bf16 gradients (exercises dtype-aware sublane packing).
    xb = x.astype(jnp.bfloat16)
    loss_b = lambda inp: jnp.sum(gradient_reverse(inp, 0.25).astype(jnp.float32))
    gb = jax.block_until_ready(jax.grad(loss_b)(xb))
    assert gb.dtype == jnp.bfloat16
    assert jnp.allclose(gb.astype(jnp.float32),
                        -0.25 * jnp.ones(x.shape, jnp.float32)), "bf16 backward"

    print("KERNEL_OK")
</pallas_src>

<mosaic_0001>
module attributes {stable_mosaic.version = 11 : i64} {
  func.func @_scale_kernel(%arg0: i32, %arg1: memref<1xf32, #tpu.memory_space<smem>>, %arg2: memref<16x128xf32, #tpu.memory_space<vmem>>, %arg3: memref<16x128xf32, #tpu.memory_space<vmem>>) attributes {dimension_semantics = [#tpu.dimension_semantics<parallel>], iteration_bounds = array<i64: 1>, scalar_prefetch = 0 : i64, scratch_operands = 0 : i64, tpu.core_type = #tpu.core_type<tc>, window_params = [{transform_indices = @transform_0, window_bounds = array<i64: 1>}, {transform_indices = @transform_1, window_bounds = array<i64: 16, 128>}, {transform_indices = @transform_2, window_bounds = array<i64: 16, 128>}]} {
    %c0 = arith.constant 0 : index
    %c0_0 = arith.constant 0 : index
    %0 = vector.load %arg2[%c0, %c0_0] : memref<16x128xf32, #tpu.memory_space<vmem>>, vector<16x128xf32>
    %c0_1 = arith.constant 0 : index
    %1 = memref.load %arg1[%c0_1] : memref<1xf32, #tpu.memory_space<smem>>
    %2 = vector.broadcast %1 : f32 to vector<16x128xf32>
    %3 = arith.mulf %0, %2 : vector<16x128xf32>
    %c0_2 = arith.constant 0 : index
    %c0_3 = arith.constant 0 : index
    %4 = vector.load %arg3[%c0_2, %c0_3] : memref<16x128xf32, #tpu.memory_space<vmem>>, vector<16x128xf32>
    tpu.vector_store %arg3[%c0_2, %c0_3], %3 {strides = array<i32>} : memref<16x128xf32, #tpu.memory_space<vmem>>, vector<16x128xf32>,
    return
  }
  func.func @transform_0(%arg0: i32) -> i32 {
    %c0_i32 = arith.constant 0 : i32
    %c0_i32_0 = arith.constant 0 : i32
    return %c0_i32 : i32
  }
  func.func @transform_1(%arg0: i32) -> (i32, i32) {
    %c0_i32 = arith.constant 0 : i32
    %c0_i32_0 = arith.constant 0 : i32
    return %arg0, %c0_i32 : i32, i32
  }
  func.func @transform_2(%arg0: i32) -> (i32, i32) {
    %c0_i32 = arith.constant 0 : i32
    %c0_i32_0 = arith.constant 0 : i32
    return %arg0, %c0_i32 : i32, i32
  }
}

</mosaic_0001>

<llo_original>
// kernel: tpu_custom_call.1
$region0: #{tpu_custom_call.1}
  #allocation0 [shape = 'u32[]', space=smem, size = 0x4, offset = 0x4, fixed_abs, tag = 'smem constant byte address 0x4 - core index']
  #allocation1 [shape = 'u32[144,128]{1,0:T(1,128)}', space=vmem, size = 0x12000, scoped, tag = 'internal scratch']
  #allocation2 [shape = 'f32[1]{0:T(128)S(6)}', space=smem, size = 0x200, scoped, tag = 'scoped memory for tpu_custom_call.1']
  %s0 = inlined_call_operand.<no memory space> [shape: f32[1], index: 0, kind: input, shape index: {}]
  %s1 = inlined_call_operand.hbm [shape: f32[16,128], index: 1, kind: input, shape index: {}, may-alias: {1,2}]
  %s2 = inlined_call_operand.hbm [shape: f32[16,128], index: 2, kind: output, shape index: {}, may-alias: {1,2}]
  %s3 = sld [smem:[#allocation0]]
  $region22: #{tpu_custom_call.1} parent=0
    _
  %s5 = ssub.s32 1, %s3
  %s6 = scalar_select 0, %s5, %s3
  %7 = sst [smem:[#allocation2]] %s0
  $region1: #{tpu_custom_call.1} parent=0
    #allocation3 [shape = 'u8[8192]{0}', space=vmem, size = 0x2000, scoped, tag = 'input window, operand 1, single buffered']
    #allocation4 [shape = 's32[1]{0}', space=sflag, size = 0x4, scoped, tag = 'scoped memory for tpu_custom_call.1']
    #allocation5 [shape = 's32[1]{0}', space=sflag, size = 0x4, scoped, tag = 'scoped memory for tpu_custom_call.1']
    #allocation6 [shape = 'u8[8192]{0}', space=vmem, size = 0x2000, scoped, tag = 'output window, operand 0, single buffered']
    %8 = vsyncpa [#allocation4], 0
    %9 = vsyncpa [#allocation5], 0
    // Predicated region
    $region2: #{tpu_custom_call.1} parent=1 // pred_check
      _
    $region3: #{tpu_custom_call.1} parent=1 // pred_check_branch
      %11 = sbr.rel (0) target = $region5
    $region4: #{tpu_custom_call.1} parent=1 // pred_region
      _
    $region5: #{tpu_custom_call.1} parent=1 // pred_fallthru
      _
    // Predicated region
    $region6: #{tpu_custom_call.1} parent=1 // pred_check
      _
    $region7: #{tpu_custom_call.1} parent=1 // pred_check_branch
      %13 = sbr.rel (0) target = $region9
    $region8: #{tpu_custom_call.1} parent=1 // pred_region
      %s15 = ssub.s32 256, 256
      %16 = vsyncadd [#allocation4], %s15
      %s17 = sshll.u32 [#allocation3], 4
      %s18 = int_to_ptr.vmem [resolvable:$true] %s17
      %23 = dma.hbm_to_vmem [thread:$0]  %s1, 256, %s18, [#allocation4], 128, 128, 8
    $region9: #{tpu_custom_call.1} parent=1 // pred_fallthru
      _
    // Predicated region
    $region10: #{tpu_custom_call.1} parent=1 // pred_check
      _
    $region11: #{tpu_custom_call.1} parent=1 // pred_check_branch
      %25 = sbr.rel (0) target = $region13
    $region12: #{tpu_custom_call.1} parent=1 // pred_region
      %26 = dma.done [#allocation4], 256
    $region13: #{tpu_custom_call.1} parent=1 // pred_fallthru
      _
    %v27 = vld [vmem:[#allocation3] sm:$0xff]
    %v28 = vld [vmem:[#allocation3 + $0x8] sm:$0xff]
    %s29 = sld [smem:[#allocation2]]
    %v30 = vstv %s29
    %v31 = vmul.f32 %v27, %v30
    %v32 = vmul.f32 %v28, %v30
    %33 = vst [vmem:[#allocation6] sm:$0xff] %v31
    %34 = vst [vmem:[#allocation6 + $0x8] sm:$0xff] %v32
    // Predicated region
    $region14: #{tpu_custom_call.1} parent=1 // pred_check
      _
    $region15: #{tpu_custom_call.1} parent=1 // pred_check_branch
      %36 = sbr.rel (0) target = $region17
    $region16: #{tpu_custom_call.1} parent=1 // pred_region
      %s38 = ssub.s32 256, 256
      %39 = vsyncadd [#allocation5], %s38
      %s40 = sshll.u32 [#allocation6], 4
      %s41 = int_to_ptr.vmem [resolvable:$true] %s40
      %46 = dma.vmem_to_hbm [thread:$0]  %s41, 256, %s2, [#allocation5], 128, 128, 8
    $region17: #{tpu_custom_call.1} parent=1 // pred_fallthru
      _
    // Predicated region
    $region18: #{tpu_custom_call.1} parent=1 // pred_check
      _
    $region19: #{tpu_custom_call.1} parent=1 // pred_check_branch
      %48 = sbr.rel (0) target = $region21
    $region20: #{tpu_custom_call.1} parent=1 // pred_region
      %49 = dma.done [#allocation5], 256
    $region21: #{tpu_custom_call.1} parent=1 // pred_fallthru
      _
    %50 = vsyncpa [#allocation4], 1
    %51 = vsyncpa [#allocation5], 1

</llo_original>
